<compile_context>
chip_gen: v6e
topology: v6e:2x2x1
jax: 0.10.0
libtpu: 0.0.40
codegen_flags: <defaults>
</compile_context>

<pallas_src>
import math
import functools

import jax
import jax.numpy as jnp
from jax.experimental import pallas as pl
from jax.experimental.pallas import tpu as pltpu

NEG_INF = -1e9  # finite stand-in for float('-inf') in additive attention masks

VMEM_SPEC = pl.BlockSpec(memory_space=pltpu.MemorySpace.VMEM)


# ----------------------------------------------------------------------------
# Small whole-array linear kernel (lat2hid, padded logits projection)
# ----------------------------------------------------------------------------
def _linear_kernel(x_ref, w_ref, b_ref, o_ref):
    o_ref[...] = (
        jnp.dot(x_ref[...], w_ref[...], preferred_element_type=jnp.float32)
        + b_ref[...]
    )


def linear(x, w, b2d):
    """x: (M, K), w: (K, N), b2d: (1, N) -> (M, N)"""
    M = x.shape[0]
    N = w.shape[1]
    return pl.pallas_call(
        _linear_kernel,
        out_shape=jax.ShapeDtypeStruct((M, N), jnp.float32),
        in_specs=[VMEM_SPEC, VMEM_SPEC, VMEM_SPEC],
        out_specs=VMEM_SPEC,
    )(x, w, b2d)


# ----------------------------------------------------------------------------
# Fused decoder layer kernel (one pallas_call per layer, grid over batch)
# ----------------------------------------------------------------------------
def _layer_norm(x, g, b):
    mu = jnp.mean(x, axis=-1, keepdims=True)
    var = jnp.mean((x - mu) ** 2, axis=-1, keepdims=True)  # biased, like PyTorch
    return (x - mu) * jax.lax.rsqrt(var + 1e-5) * g + b


def _decoder_layer_kernel(
    x_ref, mem_ref, mask_ref, pad_ref,
    wqkv_ref, bqkv_ref, wo_ref, bo_ref, ln1g_ref, ln1b_ref,
    wvc_ref, bvc_ref, woc_ref, boc_ref, ln2g_ref, ln2b_ref,
    w1_ref, b1_ref, w2_ref, b2_ref, ln3g_ref, ln3b_ref,
    o_ref, *, nheads, head_dim, e_dim,
):
    x = x_ref[...]                                            # (L, E) — one batch element
    # ---- self-attention: fused QKV projection (scale folded into Q cols) ----
    qkv = (jnp.dot(x, wqkv_ref[...], preferred_element_type=jnp.float32)
           + bqkv_ref[...])                                   # (L, 3E)
    mask = mask_ref[...] + pad_ref[...]                       # (L,L) + (1,L) -> (L,L)

    head_outs = []
    for h in range(nheads):
        lo = h * head_dim
        qh = qkv[:, lo:lo + head_dim]                         # (L, Dh)
        kh = qkv[:, e_dim + lo:e_dim + lo + head_dim]         # (L, Dh)
        vh = qkv[:, 2 * e_dim + lo:2 * e_dim + lo + head_dim]  # (L, Dh)
        s = jnp.dot(qh, kh.T, preferred_element_type=jnp.float32) + mask
        s = s - jnp.max(s, axis=-1, keepdims=True)
        p = jnp.exp(s)
        p = p * pl.reciprocal(jnp.sum(p, axis=-1, keepdims=True), approx=True)
        head_outs.append(jnp.dot(p, vh, preferred_element_type=jnp.float32))
    attn = jnp.concatenate(head_outs, axis=-1)                # (L, E)
    sa = (jnp.dot(attn, wo_ref[...], preferred_element_type=jnp.float32)
          + bo_ref[...])
    h1 = _layer_norm(x + sa, ln1g_ref[...], ln1b_ref[...])    # residual + LN1 fused

    # ---- cross-attention with a single memory token: softmax == 1, so the
    #      output is exactly out_proj(v_proj(memory)) broadcast over seq ----
    mem = mem_ref[...]                                        # (1, E)
    vmem = (jnp.dot(mem, wvc_ref[...], preferred_element_type=jnp.float32)
            + bvc_ref[...])
    cross = (jnp.dot(vmem, woc_ref[...], preferred_element_type=jnp.float32)
             + boc_ref[...])                                  # (1, E)
    h2 = _layer_norm(h1 + cross, ln2g_ref[...], ln2b_ref[...])

    # ---- feed-forward (linear -> ReLU -> linear) + residual + LN3 ----
    f = jnp.maximum(
        jnp.dot(h2, w1_ref[...], preferred_element_type=jnp.float32) + b1_ref[...],
        0.0,
    )
    f = jnp.dot(f, w2_ref[...], preferred_element_type=jnp.float32) + b2_ref[...]
    o_ref[...] = _layer_norm(h2 + f, ln3g_ref[...], ln3b_ref[...])


def decoder_layer(x_ble, memory_b1e, tgt_mask, pad_add_b1l, lp, nheads):
    """x_ble: (B,L,E) batch-first, memory_b1e: (B,1,E), tgt_mask: (L,L),
    pad_add_b1l: (B,1,L) additive. Returns (B,L,E)."""
    B, L, E = x_ble.shape
    Dh = E // nheads

    def bspec(arr):
        nd = arr.ndim
        return pl.BlockSpec(arr.shape, lambda b, _n=nd: (0,) * _n)

    kernel = functools.partial(
        _decoder_layer_kernel, nheads=nheads, head_dim=Dh, e_dim=E)

    param_arrays = [
        lp["wqkv"], lp["bqkv"], lp["wo"], lp["bo"], lp["ln1_g"], lp["ln1_b"],
        lp["wv_c"], lp["bv_c"], lp["wo_c"], lp["bo_c"], lp["ln2_g"], lp["ln2_b"],
        lp["ff_w1"], lp["ff_b1"], lp["ff_w2"], lp["ff_b2"], lp["ln3_g"], lp["ln3_b"],
    ]

    in_specs = [
        pl.BlockSpec((None, L, E), lambda b: (b, 0, 0)),   # x (one batch row)
        pl.BlockSpec((None, 1, E), lambda b: (b, 0, 0)),   # memory token
        pl.BlockSpec((L, L), lambda b: (0, 0)),            # causal mask (additive)
        pl.BlockSpec((None, 1, L), lambda b: (b, 0, 0)),   # key-padding mask (additive)
    ] + [bspec(a) for a in param_arrays]

    return pl.pallas_call(
        kernel,
        out_shape=jax.ShapeDtypeStruct((B, L, E), jnp.float32),
        grid=(B,),
        in_specs=in_specs,
        out_specs=pl.BlockSpec((None, L, E), lambda b: (b, 0, 0)),
        compiler_params=pltpu.CompilerParams(dimension_semantics=("parallel",)),
    )(x_ble, memory_b1e, tgt_mask, pad_add_b1l, *param_arrays)


# ----------------------------------------------------------------------------
# Weight prep: fold attention scale, pack QKV, pad logits to lane-dense width
# ----------------------------------------------------------------------------
def prepare_decoder_params(params, cfg):
    e_dim, nheads, ntokens = cfg["e_dim"], cfg["nheads"], cfg["ntokens"]
    Dh = e_dim // nheads
    scale = 1.0 / math.sqrt(Dh)
    nt_pad = ((ntokens + 127) // 128) * 128

    layers = []
    for lp in params["layers"]:
        sa, ca = lp["self_attn"], lp["cross_attn"]
        wqkv = jnp.concatenate([sa["wq"] * scale, sa["wk"], sa["wv"]], axis=1)
        bqkv = jnp.concatenate([sa["bq"] * scale, sa["bk"], sa["bv"]]).reshape(1, 3 * e_dim)
        layers.append(dict(
            wqkv=wqkv, bqkv=bqkv,
            wo=sa["wo"], bo=sa["bo"].reshape(1, e_dim),
            ln1_g=lp["ln1_g"].reshape(1, e_dim), ln1_b=lp["ln1_b"].reshape(1, e_dim),
            # cross-attention: only V and out projections are needed (Lk == 1)
            wv_c=ca["wv"], bv_c=ca["bv"].reshape(1, e_dim),
            wo_c=ca["wo"], bo_c=ca["bo"].reshape(1, e_dim),
            ln2_g=lp["ln2_g"].reshape(1, e_dim), ln2_b=lp["ln2_b"].reshape(1, e_dim),
            ff_w1=lp["ff_w1"], ff_b1=lp["ff_b1"].reshape(1, -1),
            ff_w2=lp["ff_w2"], ff_b2=lp["ff_b2"].reshape(1, e_dim),
            ln3_g=lp["ln3_g"].reshape(1, e_dim), ln3_b=lp["ln3_b"].reshape(1, e_dim),
        ))

    w_log = jnp.zeros((e_dim, nt_pad), jnp.float32).at[:, :ntokens].set(params["hid2logits_w"])
    b_log = jnp.zeros((1, nt_pad), jnp.float32).at[0, :ntokens].set(params["hid2logits_b"])

    return dict(
        embedding=params["embedding"],
        pe=params["pe"],
        lat2hid_w=params["lat2hid_w"],
        lat2hid_b=params["lat2hid_b"].reshape(1, e_dim),
        hid2logits_w=w_log,
        hid2logits_b=b_log,
        layers=layers,
    )


# ----------------------------------------------------------------------------
# Forward pass
# ----------------------------------------------------------------------------
def decoder_forward(prepped, cfg, z, sentences, tgt_mask, tgt_pad_mask):
    """z: (B,z_dim), sentences: (L,B) int32, tgt_mask: (L,L) float additive,
    tgt_pad_mask: (B,L) bool (True = pad position).  Returns (L,B,ntokens)."""
    e_dim, nheads, ntokens = cfg["e_dim"], cfg["nheads"], cfg["ntokens"]
    B = z.shape[0]
    L = sentences.shape[0]

    # lat2hid -> single-token memory per batch element
    memory = linear(z, prepped["lat2hid_w"], prepped["lat2hid_b"]).reshape(B, 1, e_dim)

    # embedding * sqrt(E) + positional encoding (dropout: eval-mode identity)
    emb = prepped["embedding"][sentences] * math.sqrt(e_dim)   # (L,B,E)
    emb = emb + prepped["pe"][:L]                              # pe: (max_len,1,E)
    x = emb.transpose(1, 0, 2)                                 # (B,L,E) batch-first for the grid

    pad_add = jnp.where(tgt_pad_mask, NEG_INF, 0.0).astype(jnp.float32).reshape(B, 1, L)
    tgt_mask = tgt_mask.astype(jnp.float32)

    for lp in prepped["layers"]:
        x = decoder_layer(x, memory, tgt_mask, pad_add, lp, nheads)

    # lane-dense (128-wide) logits projection, sliced back to ntokens outside
    logits_pad = linear(x.reshape(B * L, e_dim),
                        prepped["hid2logits_w"], prepped["hid2logits_b"])
    logits = logits_pad[:, :ntokens].reshape(B, L, ntokens).transpose(1, 0, 2)
    return logits


# ----------------------------------------------------------------------------
# Deterministic parameter init (synthetic weights, shapes from __init__)
# ----------------------------------------------------------------------------
def init_params(key, *, ntokens, e_dim, z_dim, nheads, nTlayers, ff_dim, pad_idx, max_len=50):
    keys = iter(jax.random.split(key, 256))

    def nrm(shape, scale=0.05):
        return scale * jax.random.normal(next(keys), shape, jnp.float32)

    emb = nrm((ntokens, e_dim))
    emb = emb.at[pad_idx].set(0.0)  # padding_idx row is zero

    # PositionalEncoding buffer: (max_len, 1, e_dim)
    position = jnp.arange(max_len, dtype=jnp.float32)[:, None]
    div_term = jnp.exp(jnp.arange(0, e_dim, 2, dtype=jnp.float32) * (-math.log(10000.0) / e_dim))
    pe = jnp.zeros((max_len, e_dim), jnp.float32)
    pe = pe.at[:, 0::2].set(jnp.sin(position * div_term))
    pe = pe.at[:, 1::2].set(jnp.cos(position * div_term))
    pe = pe[:, None, :]

    def attn_params():
        return dict(
            wq=nrm((e_dim, e_dim)), bq=nrm((e_dim,)),
            wk=nrm((e_dim, e_dim)), bk=nrm((e_dim,)),
            wv=nrm((e_dim, e_dim)), bv=nrm((e_dim,)),
            wo=nrm((e_dim, e_dim)), bo=nrm((e_dim,)),
        )

    layers = []
    for _ in range(nTlayers):
        layers.append(dict(
            self_attn=attn_params(),
            cross_attn=attn_params(),
            ln1_g=jnp.ones((e_dim,), jnp.float32), ln1_b=jnp.zeros((e_dim,), jnp.float32),
            ln2_g=jnp.ones((e_dim,), jnp.float32), ln2_b=jnp.zeros((e_dim,), jnp.float32),
            ln3_g=jnp.ones((e_dim,), jnp.float32), ln3_b=jnp.zeros((e_dim,), jnp.float32),
            ff_w1=nrm((e_dim, ff_dim)), ff_b1=nrm((ff_dim,)),
            ff_w2=nrm((ff_dim, e_dim)), ff_b2=nrm((e_dim,)),
        ))

    params = dict(
        embedding=emb,
        pe=pe,
        lat2hid_w=nrm((z_dim, e_dim)), lat2hid_b=nrm((e_dim,)),
        hid2logits_w=nrm((e_dim, ntokens)), hid2logits_b=nrm((ntokens,)),
        layers=layers,
    )
    cfg = dict(ntokens=ntokens, e_dim=e_dim, nheads=nheads)
    return params, cfg


# ----------------------------------------------------------------------------
# Main
# ----------------------------------------------------------------------------
if __name__ == "__main__":
    # Small, forward-consistent shapes
    ntokens, e_dim, z_dim, nheads, nTlayers, ff_dim, pad_idx = 50, 32, 8, 4, 2, 64, 1
    L, B = 8, 2  # (seq, batch)

    key = jax.random.PRNGKey(0)
    pkey, zkey, skey = jax.random.split(key, 3)

    params, cfg = init_params(
        pkey, ntokens=ntokens, e_dim=e_dim, z_dim=z_dim, nheads=nheads,
        nTlayers=nTlayers, ff_dim=ff_dim, pad_idx=pad_idx,
    )
    prepped = prepare_decoder_params(params, cfg)

    # Inputs
    z = jax.random.normal(zkey, (B, z_dim), jnp.float32)
    sentences = jax.random.randint(skey, (L, B), 2, ntokens, dtype=jnp.int32)
    # force trailing pads (so every causal row keeps at least one unmasked key)
    sentences = sentences.at[L - 2:, 0].set(pad_idx)
    sentences = sentences.at[L - 1:, 1].set(pad_idx)

    # causal additive mask (like generate_square_subsequent_mask)
    tgt_mask = jnp.where(
        jnp.triu(jnp.ones((L, L), jnp.bool_), k=1), NEG_INF, 0.0
    ).astype(jnp.float32)
    tgt_pad_mask = (sentences.T == pad_idx)  # (B, L), True = ignore

    logits = decoder_forward(prepped, cfg, z, sentences, tgt_mask, tgt_pad_mask)
    logits = jax.block_until_ready(logits)

    assert logits.shape == (L, B, ntokens), logits.shape
    assert bool(jnp.all(jnp.isfinite(logits)))
    # TODO(synk): dropout layers are eval-mode identities (no stochastic dropout in-kernel).
    print("KERNEL_OK")
</pallas_src>

<mosaic_0001>
module attributes {stable_mosaic.version = 11 : i64} {
  func.func @_linear_kernel(%arg0: memref<2x8xf32, #tpu.memory_space<vmem>>, %arg1: memref<8x32xf32, #tpu.memory_space<vmem>>, %arg2: memref<1x32xf32, #tpu.memory_space<vmem>>, %arg3: memref<2x32xf32, #tpu.memory_space<vmem>>) attributes {dimension_semantics = [], scalar_prefetch = 0 : i64, scratch_operands = 0 : i64, tpu.core_type = #tpu.core_type<tc>} {
    %c0 = arith.constant 0 : index
    %c0_0 = arith.constant 0 : index
    %0 = vector.load %arg0[%c0, %c0_0] : memref<2x8xf32, #tpu.memory_space<vmem>>, vector<2x8xf32>
    %c0_1 = arith.constant 0 : index
    %c0_2 = arith.constant 0 : index
    %1 = vector.load %arg1[%c0_1, %c0_2] : memref<8x32xf32, #tpu.memory_space<vmem>>, vector<8x32xf32>
    %cst = arith.constant dense<0.000000e+00> : vector<2x32xf32>
    %2 = tpu.matmul %0, %1, %cst {dimension_numbers = #tpu.dot_dimension_numbers<[1], [0], [0], [1], [0, 0, 1, 1], [], []>} : vector<2x8xf32>, vector<8x32xf32>, vector<2x32xf32> -> vector<2x32xf32>
    %c0_3 = arith.constant 0 : index
    %c0_4 = arith.constant 0 : index
    %3 = vector.load %arg2[%c0_3, %c0_4] : memref<1x32xf32, #tpu.memory_space<vmem>>, vector<1x32xf32>
    %4 = vector.broadcast %3 : vector<1x32xf32> to vector<2x32xf32>
    %5 = arith.addf %2, %4 : vector<2x32xf32>
    %c0_5 = arith.constant 0 : index
    %c0_6 = arith.constant 0 : index
    %6 = vector.load %arg3[%c0_5, %c0_6] : memref<2x32xf32, #tpu.memory_space<vmem>>, vector<2x32xf32>
    tpu.vector_store %arg3[%c0_5, %c0_6], %5 {strides = array<i32>} : memref<2x32xf32, #tpu.memory_space<vmem>>, vector<2x32xf32>,
    return
  }
}

</mosaic_0001>

<llo_original>
// kernel: tpu_custom_call.1
$region0: #{tpu_custom_call.1}
  #allocation0 [shape = 'u32[]', space=smem, size = 0x4, offset = 0x4, fixed_abs, tag = 'smem constant byte address 0x4 - core index']
  #allocation1 [shape = 'u32[144,128]{1,0:T(1,128)}', space=vmem, size = 0x12000, scoped, tag = 'internal scratch']
  %s0 = inlined_call_operand.hbm [shape: f32[2,8], index: 0, kind: input, shape index: {}]
  %s1 = inlined_call_operand.hbm [shape: f32[8,32], index: 1, kind: input, shape index: {}]
  %s2 = inlined_call_operand.vmem [shape: f32[1,32], index: 2, kind: input, shape index: {}]
  %s3 = inlined_call_operand.hbm [shape: f32[2,32], index: 3, kind: output, shape index: {}]
  %s4 = sld [smem:[#allocation0]]
  $region30: #{tpu_custom_call.1} parent=0
    _
  %s6 = ssub.s32 1, %s4
  %s7 = scalar_select 0, %s6, %s4
  $region1: #{tpu_custom_call.1} parent=0
    #allocation2 [shape = 'u8[1024]{0}', space=vmem, size = 0x400, scoped, tag = 'input window, operand 0, single buffered']
    #allocation3 [shape = 's32[1]{0}', space=sflag, size = 0x4, scoped, tag = 'scoped memory for tpu_custom_call.1']
    #allocation4 [shape = 's32[1]{0}', space=sflag, size = 0x4, scoped, tag = 'scoped memory for tpu_custom_call.1']
    #allocation5 [shape = 'u8[4096]{0}', space=vmem, size = 0x1000, scoped, tag = 'input window, operand 1, single buffered']
    #allocation6 [shape = 's32[1]{0}', space=sflag, size = 0x4, scoped, tag = 'scoped memory for tpu_custom_call.1']
    #allocation7 [shape = 'u8[1024]{0}', space=vmem, size = 0x400, scoped, tag = 'output window, operand 0, single buffered']
    %8 = vsyncpa [#allocation3], 0
    %9 = vsyncpa [#allocation6], 0
    %10 = vsyncpa [#allocation4], 0
    // Predicated region
    $region2: #{tpu_custom_call.1} parent=1 // pred_check
      _
    $region3: #{tpu_custom_call.1} parent=1 // pred_check_branch
      %12 = sbr.rel (0) target = $region5
    $region4: #{tpu_custom_call.1} parent=1 // pred_region
      %s14 = ssub.s32 32, 32
      %15 = vsyncadd [#allocation3], %s14
      %s17 = sshll.u32 [#allocation2], 4
      %s18 = int_to_ptr.vmem [resolvable:$true] %s17
      %20 = dma.hbm_to_vmem [thread:$0]  %s0, 32, %s18, [#allocation3]
    $region5: #{tpu_custom_call.1} parent=1 // pred_fallthru
      _
    // Predicated region
    $region6: #{tpu_custom_call.1} parent=1 // pred_check
      _
    $region7: #{tpu_custom_call.1} parent=1 // pred_check_branch
      %22 = sbr.rel (0) target = $region9
    $region8: #{tpu_custom_call.1} parent=1 // pred_region
      %s24 = ssub.s32 128, 128
      %25 = vsyncadd [#allocation6], %s24
      %s27 = sshll.u32 [#allocation5], 4
      %s28 = int_to_ptr.vmem [resolvable:$true] %s27
      %30 = dma.hbm_to_vmem [thread:$0]  %s1, 128, %s28, [#allocation6]
    $region9: #{tpu_custom_call.1} parent=1 // pred_fallthru
      _
    // Predicated region
    $region10: #{tpu_custom_call.1} parent=1 // pred_check
      _
    $region11: #{tpu_custom_call.1} parent=1 // pred_check_branch
      %32 = sbr.rel (0) target = $region13
    $region12: #{tpu_custom_call.1} parent=1 // pred_region
      _
    $region13: #{tpu_custom_call.1} parent=1 // pred_fallthru
      _
    // Predicated region
    $region14: #{tpu_custom_call.1} parent=1 // pred_check
      _
    $region15: #{tpu_custom_call.1} parent=1 // pred_check_branch
      %34 = sbr.rel (0) target = $region17
    $region16: #{tpu_custom_call.1} parent=1 // pred_region
      %35 = dma.done [#allocation3], 32
    $region17: #{tpu_custom_call.1} parent=1 // pred_fallthru
      _
    // Predicated region
    $region18: #{tpu_custom_call.1} parent=1 // pred_check
      _
    $region19: #{tpu_custom_call.1} parent=1 // pred_check_branch
      %37 = sbr.rel (0) target = $region21
    $region20: #{tpu_custom_call.1} parent=1 // pred_region
      %38 = dma.done [#allocation6], 128
    $region21: #{tpu_custom_call.1} parent=1 // pred_fallthru
      _
    %v39 = vld [vmem:[#allocation2] sm:$0x3]
    %v40 = vld [vmem:[#allocation5] sm:$0xff]
    %v41 = vld [vmem:[%s2] sm:$0x1]
    %v43 = vlaneseq
    %v44 = vshrl.u32 %v43, 7
    %v45 = vsub.s32 0, %v44
    %v46 = vrot.slane %v41, %v45
    %vm48 = vcmask 64512
    %v50 = vsel %vm48, %v39, 0
    %52 = vmatprep.subr.mxu0 0.0
    %53 = vmatpush1.msra.mxu0 0.0
    %54 = vmatprep.subr.mxu0 0.0
    %55 = vmatpush1.msra.mxu0 0.0
    %56 = vmatprep.subr.mxu0 0.0
    %57 = vmatpush1.msra.mxu0 0.0
    %58 = vmatprep.subr.mxu0 0.0
    %59 = vmatpush1.msra.mxu0 0.0
    %60 = vmatprep.subr.mxu0 0.0
    %61 = vmatpush1.msra.mxu0 0.0
    %62 = vmatprep.subr.mxu0 0.0
    %63 = vmatpush1.msra.mxu0 0.0
    %64 = vmatprep.subr.mxu0 0.0
    %65 = vmatpush1.msra.mxu0 0.0
    %66 = vmatprep.subr.mxu0 0.0
    %67 = vmatpush1.msra.mxu0 0.0
    %68 = vmatprep.subr.mxu0 0.0
    %69 = vmatpush1.msra.mxu0 0.0
    %70 = vmatprep.subr.mxu0 0.0
    %71 = vmatpush1.msra.mxu0 0.0
    %72 = vmatprep.subr.mxu0 0.0
    %73 = vmatpush1.msra.mxu0 0.0
    %74 = vmatprep.subr.mxu0 0.0
    %75 = vmatpush1.msra.mxu0 0.0
    %76 = vmatprep.subr.mxu0 0.0
    %77 = vmatpush1.msra.mxu0 0.0
    %78 = vmatprep.subr.mxu0 0.0
    %79 = vmatpush1.msra.mxu0 0.0
    %80 = vmatprep.subr.mxu0 0.0
    %81 = vmatpush1.msra.mxu0 0.0
    %82 = vmatprep.subr.mxu0 0.0
    %83 = vmatpush1.msra.mxu0 %v40
    %84 = vmatprep.subr.mxu0 0.0
    %85 = vmatpush2.msra.mxu0 0.0
    %86 = vmatprep.subr.mxu0 0.0
    %87 = vmatpush2.msra.mxu0 0.0
    %88 = vmatprep.subr.mxu0 0.0
    %89 = vmatpush2.msra.mxu0 0.0
    %90 = vmatprep.subr.mxu0 0.0
    %91 = vmatpush2.msra.mxu0 0.0
    %92 = vmatprep.subr.mxu0 0.0
    %93 = vmatpush2.msra.mxu0 0.0
    %94 = vmatprep.subr.mxu0 0.0
    %95 = vmatpush2.msra.mxu0 0.0
    %96 = vmatprep.subr.mxu0 0.0
    %97 = vmatpush2.msra.mxu0 0.0
    %98 = vmatprep.subr.mxu0 0.0
    %99 = vmatpush2.msra.mxu0 0.0
    %100 = vmatprep.subr.mxu0 0.0
    %101 = vmatpush2.msra.mxu0 0.0
    %102 = vmatprep.subr.mxu0 0.0
    %103 = vmatpush2.msra.mxu0 0.0
    %104 = vmatprep.subr.mxu0 0.0
    %105 = vmatpush2.msra.mxu0 0.0
    %106 = vmatprep.subr.mxu0 0.0
    %107 = vmatpush2.msra.mxu0 0.0
    %108 = vmatprep.subr.mxu0 0.0
    %109 = vmatpush2.msra.mxu0 0.0
    %110 = vmatprep.subr.mxu0 0.0
    %111 = vmatpush2.msra.mxu0 0.0
    %112 = vmatprep.subr.mxu0 0.0
    %113 = vmatpush2.msra.mxu0 0.0
    %114 = vmatprep.subr.mxu0 0.0
    %115 = vmatpush2.msra.mxu0 0.0
    %116 = vmatprep.mubr.f32.mxu0 0.0
    %117 = vmatmul.mubr.f32.gmra.mxu0 %v50
    %v118 = vpop.f32.mrf.mxu0
    %v119 = vadd.f32 %v46, %v118
    %v120 = vpop.f32.mrf.mxu0
    %121 = vdwg.mxu0
    %vm122 = vcmask 254976
    %123 = vst.msk [vmem:[#allocation7] sm:$0x3] %vm122, %v119
    // Predicated region
    $region22: #{tpu_custom_call.1} parent=1 // pred_check
      _
    $region23: #{tpu_custom_call.1} parent=1 // pred_check_branch
      %125 = sbr.rel (0) target = $region25
    $region24: #{tpu_custom_call.1} parent=1 // pred_region
      %s127 = ssub.s32 32, 32
      %128 = vsyncadd [#allocation4], %s127
      %s130 = sshll.u32 [#allocation7], 4
      %s131 = int_to_ptr.vmem [resolvable:$true] %s130
      %133 = dma.vmem_to_hbm [thread:$0]  %s131, 32, %s3, [#allocation4]
    $region25: #{tpu_custom_call.1} parent=1 // pred_fallthru
      _
    // Predicated region
    $region26: #{tpu_custom_call.1} parent=1 // pred_check
      _
    $region27: #{tpu_custom_call.1} parent=1 // pred_check_branch
      %135 = sbr.rel (0) target = $region29
    $region28: #{tpu_custom_call.1} parent=1 // pred_region
      %136 = dma.done [#allocation4], 32
    $region29: #{tpu_custom_call.1} parent=1 // pred_fallthru
      _
    %137 = vsyncpa [#allocation3], 1
    %138 = vsyncpa [#allocation6], 1
    %139 = vsyncpa [#allocation4], 1

</llo_original>
